<compile_context>
chip_gen: v5e
topology: v5e:2x2
jax: 0.10.0
libtpu: 0.0.40
codegen_flags: <defaults>
</compile_context>

<pallas_src>
import functools

import jax
import jax.numpy as jnp
from jax.experimental import pallas as pl
from jax.experimental.pallas import tpu as pltpu


def _lr_batch_avg_kernel(x_ref, w_ref, b_ref, sm_ref, psum_ref, *, batch, tile_b):
    i = pl.program_id(0)

    # Linear layer: [TB, K] @ [K, N] + [1, N], f32 accumulation on the MXU.
    logits = jnp.dot(
        x_ref[...], w_ref[...],
        preferred_element_type=jnp.float32,
        precision=jax.lax.Precision.HIGHEST,
    ) + b_ref[...]

    # Numerically stable row-wise softmax (dim=1).  Exact divide (no approx
    # reciprocal) to keep parity with the PyTorch / f32 reference.
    m = jnp.max(logits, axis=1, keepdims=True)
    e = jnp.exp(logits - m)
    sm = e / jnp.sum(e, axis=1, keepdims=True)
    sm_ref[...] = sm.astype(sm_ref.dtype)

    # Per-tile partial sum over batch rows.  Each grid step writes its own row
    # of the partial-sum output -> no carried accumulator, grid stays parallel.
    rem = batch % tile_b  # static Python int
    if rem == 0:
        # Every tile is full: no row masking needed anywhere.
        psum_ref[...] = jnp.sum(sm, axis=0, keepdims=True)
    else:
        last = pl.num_programs(0) - 1

        @pl.when(i < last)
        def _():
            psum_ref[...] = jnp.sum(sm, axis=0, keepdims=True)

        @pl.when(i == last)
        def _():
            # Only `rem` rows of the final tile are real batch rows; the rest
            # are out-of-bounds padding (unspecified values, possibly NaN) and
            # must not contribute to the mean.  jnp.where is NaN-safe here.
            row = jax.lax.broadcasted_iota(jnp.int32, sm.shape, 0)
            psum_ref[...] = jnp.sum(
                jnp.where(row < rem, sm, 0.0), axis=0, keepdims=True)


def _vmem_limit_bytes():
    """Per-generation VMEM budget: ~3/4 of physical, capped at 100 MiB.

    128 MiB physical (v5e/v6e) -> 96 MiB; 64 MiB physical (v7x) -> 48 MiB.
    Falls back to the conservative v7x figure when no TPU is attached
    (e.g. interpret mode on CPU).
    """
    phys = 64 * 1024 * 1024
    try:
        info = pltpu.get_tpu_info()
        phys = int(getattr(info, "vmem_capacity_bytes", phys)) or phys
    except Exception:
        pass
    return min((phys * 3) // 4, 100 * 1024 * 1024)


def lr_batch_avg(x, w, b, *, max_tile_b=4096, vmem_limit_bytes=None):
    """x: [B, K], w: [K, N], b: [N].  Returns (mean [N], softmax [B, N])."""
    x = jnp.asarray(x, jnp.float32)
    w = jnp.asarray(w, jnp.float32)
    b = jnp.asarray(b, jnp.float32)

    B, K = x.shape
    Kw, N = w.shape
    assert Kw == K and b.shape == (N,)

    if vmem_limit_bytes is None:
        vmem_limit_bytes = _vmem_limit_bytes()

    # Derive the batch tile from the VMEM budget:
    #   resident  = single-buffered W + b
    #   per_row   = double-buffered x tile row + double-buffered softmax tile row
    itemsize = 4  # f32
    resident = itemsize * (K * N + N)
    per_row = 2 * itemsize * (K + N)
    headroom = 4 * 1024 * 1024
    tb_budget = max(8, (vmem_limit_bytes - resident - headroom) // per_row)
    # TODO(synk): for very large K*N (resident W alone near the VMEM limit,
    # e.g. K=N=4096 on v7x) add an inner K grid axis with a logits accumulator
    # instead of keeping the full-K weight resident.

    TB = int(min(max_tile_b, tb_budget))
    TB = max(8, (TB // 8) * 8)          # sublane-aligned batch tile
    if TB >= B:
        TB = B                           # single tile covering the whole batch
    num_tiles = -(-B // TB)

    b2 = b.reshape(1, N)
    kernel = functools.partial(_lr_batch_avg_kernel, batch=B, tile_b=TB)

    sm, psum = pl.pallas_call(
        kernel,
        out_shape=(
            jax.ShapeDtypeStruct((B, N), jnp.float32),          # softmax (unpadded)
            jax.ShapeDtypeStruct((num_tiles, N), jnp.float32),  # per-tile sums
        ),
        grid=(num_tiles,),
        in_specs=[
            # x: batch-tiled, auto double-buffered by the pipeline.
            pl.BlockSpec((TB, K), lambda i: (i, 0)),
            # W, b: resident across the whole grid -> single-buffered.
            pl.BlockSpec((K, N), lambda i: (0, 0), pipeline_mode=pl.Buffered(1)),
            pl.BlockSpec((1, N), lambda i: (0, 0), pipeline_mode=pl.Buffered(1)),
        ],
        out_specs=(
            pl.BlockSpec((TB, N), lambda i: (i, 0)),
            pl.BlockSpec((1, N), lambda i: (i, 0)),
        ),
        compiler_params=pltpu.CompilerParams(
            dimension_semantics=("parallel",),
            vmem_limit_bytes=int(vmem_limit_bytes),
        ),
    )(x, w, b2)

    # Tiny cross-tile reduction (num_tiles x N) outside the kernel.
    mean = jnp.sum(psum, axis=0) / B
    return mean, sm


def _reference(x, w, b):
    logits = jnp.dot(x, w, precision=jax.lax.Precision.HIGHEST) + b
    sm = jax.nn.softmax(logits, axis=1)
    return sm.mean(axis=0), sm


if __name__ == "__main__":
    key = jax.random.PRNGKey(0)
    kx, kw, kb, kx2 = jax.random.split(key, 4)

    # nn.Linear(in_features=32, out_features=16)-style parameters.
    K, N = 32, 16
    bound = float(1.0 / (K ** 0.5))
    w = jax.random.uniform(kw, (K, N), minval=-bound, maxval=bound,
                           dtype=jnp.float32)
    b = jax.random.uniform(kb, (N,), minval=-bound, maxval=bound,
                           dtype=jnp.float32)

    # Case 1: small single-tile batch.
    B = 8
    x = jax.random.normal(kx, (B, K), dtype=jnp.float32)
    mean_out, sm_out = lr_batch_avg(x, w, b)
    jax.block_until_ready((mean_out, sm_out))
    mean_ref, sm_ref = _reference(x, w, b)
    assert mean_out.shape == (N,) and sm_out.shape == (B, N)
    assert jnp.allclose(sm_out, sm_ref, atol=2e-5, rtol=1e-4)
    assert jnp.allclose(mean_out, mean_ref, atol=2e-5, rtol=1e-4)

    # Case 2: multi-tile grid with a partial last tile (40 = 16 + 16 + 8):
    # exercises the cross-tile partial-sum reduction and last-tile row masking.
    B2 = 40
    x2 = jax.random.normal(kx2, (B2, K), dtype=jnp.float32)
    mean2, sm2 = lr_batch_avg(x2, w, b, max_tile_b=16)
    jax.block_until_ready((mean2, sm2))
    mean2_ref, sm2_ref = _reference(x2, w, b)
    assert mean2.shape == (N,) and sm2.shape == (B2, N)
    assert jnp.allclose(sm2, sm2_ref, atol=2e-5, rtol=1e-4)
    assert jnp.allclose(mean2, mean2_ref, atol=2e-5, rtol=1e-4)

    print("KERNEL_OK")
</pallas_src>

<mosaic_0001>
module attributes {stable_mosaic.version = 11 : i64} {
  func.func @_lr_batch_avg_kernel(%arg0: i32, %arg1: memref<8x32xf32, #tpu.memory_space<vmem>>, %arg2: memref<32x16xf32, #tpu.memory_space<vmem>>, %arg3: memref<1x16xf32, #tpu.memory_space<vmem>>, %arg4: memref<8x16xf32, #tpu.memory_space<vmem>>, %arg5: memref<1x16xf32, #tpu.memory_space<vmem>>) attributes {dimension_semantics = [#tpu.dimension_semantics<parallel>], iteration_bounds = array<i64: 1>, scalar_prefetch = 0 : i64, scratch_operands = 0 : i64, tpu.core_type = #tpu.core_type<tc>, window_params = [{transform_indices = @transform_0, window_bounds = array<i64: 8, 32>}, {pipeline_mode = #tpu.pipeline_mode<synchronous>, transform_indices = @transform_1, window_bounds = array<i64: 32, 16>}, {pipeline_mode = #tpu.pipeline_mode<synchronous>, transform_indices = @transform_2, window_bounds = array<i64: 1, 16>}, {transform_indices = @transform_3, window_bounds = array<i64: 8, 16>}, {transform_indices = @transform_4, window_bounds = array<i64: 1, 16>}]} {
    %c0 = arith.constant 0 : index
    %c0_0 = arith.constant 0 : index
    %0 = vector.load %arg1[%c0, %c0_0] : memref<8x32xf32, #tpu.memory_space<vmem>>, vector<8x32xf32>
    %c0_1 = arith.constant 0 : index
    %c0_2 = arith.constant 0 : index
    %1 = vector.load %arg2[%c0_1, %c0_2] : memref<32x16xf32, #tpu.memory_space<vmem>>, vector<32x16xf32>
    %cst = arith.constant dense<0.000000e+00> : vector<8x16xf32>
    %2 = tpu.matmul %0, %1, %cst {dimension_numbers = #tpu.dot_dimension_numbers<[1], [0], [0], [1], [0, 0, 1, 1], [], []>, precision = #tpu.contract_precision<fp32>} : vector<8x32xf32>, vector<32x16xf32>, vector<8x16xf32> -> vector<8x16xf32>
    %c0_3 = arith.constant 0 : index
    %c0_4 = arith.constant 0 : index
    %3 = vector.load %arg3[%c0_3, %c0_4] : memref<1x16xf32, #tpu.memory_space<vmem>>, vector<1x16xf32>
    %4 = vector.broadcast %3 : vector<1x16xf32> to vector<8x16xf32>
    %5 = arith.addf %2, %4 : vector<8x16xf32>
    %cst_5 = arith.constant dense<0xFF800000> : vector<8xf32>
    %6 = vector.multi_reduction <maximumf>, %5, %cst_5 [1] : vector<8x16xf32> to vector<8xf32>
    %7 = vector.shape_cast %6 : vector<8xf32> to vector<8x1xf32>
    %8 = vector.broadcast %7 : vector<8x1xf32> to vector<8x16xf32>
    %9 = arith.subf %5, %8 : vector<8x16xf32>
    %10 = math.exp %9 : vector<8x16xf32>
    %cst_6 = arith.constant dense<0.000000e+00> : vector<8xf32>
    %11 = vector.multi_reduction <add>, %10, %cst_6 [1] : vector<8x16xf32> to vector<8xf32>
    %12 = vector.shape_cast %11 : vector<8xf32> to vector<8x1xf32>
    %13 = vector.broadcast %12 : vector<8x1xf32> to vector<8x16xf32>
    %14 = arith.divf %10, %13 : vector<8x16xf32>
    %c0_7 = arith.constant 0 : index
    %c0_8 = arith.constant 0 : index
    %15 = vector.load %arg4[%c0_7, %c0_8] : memref<8x16xf32, #tpu.memory_space<vmem>>, vector<8x16xf32>
    tpu.vector_store %arg4[%c0_7, %c0_8], %14 {strides = array<i32>} : memref<8x16xf32, #tpu.memory_space<vmem>>, vector<8x16xf32>,
    %cst_9 = arith.constant dense<0.000000e+00> : vector<16xf32>
    %16 = vector.multi_reduction <add>, %14, %cst_9 [0] : vector<8x16xf32> to vector<16xf32>
    %17 = vector.shape_cast %16 : vector<16xf32> to vector<1x16xf32>
    %c0_10 = arith.constant 0 : index
    %c0_11 = arith.constant 0 : index
    %18 = vector.load %arg5[%c0_10, %c0_11] : memref<1x16xf32, #tpu.memory_space<vmem>>, vector<1x16xf32>
    tpu.vector_store %arg5[%c0_10, %c0_11], %17 {strides = array<i32>} : memref<1x16xf32, #tpu.memory_space<vmem>>, vector<1x16xf32>,
    return
  }
  func.func @transform_0(%arg0: i32) -> (i32, i32) {
    %c0_i32 = arith.constant 0 : i32
    %c0_i32_0 = arith.constant 0 : i32
    return %arg0, %c0_i32 : i32, i32
  }
  func.func @transform_1(%arg0: i32) -> (i32, i32) {
    %c0_i32 = arith.constant 0 : i32
    %c0_i32_0 = arith.constant 0 : i32
    %c0_i32_1 = arith.constant 0 : i32
    return %c0_i32, %c0_i32_0 : i32, i32
  }
  func.func @transform_2(%arg0: i32) -> (i32, i32) {
    %c0_i32 = arith.constant 0 : i32
    %c0_i32_0 = arith.constant 0 : i32
    %c0_i32_1 = arith.constant 0 : i32
    return %c0_i32, %c0_i32_0 : i32, i32
  }
  func.func @transform_3(%arg0: i32) -> (i32, i32) {
    %c0_i32 = arith.constant 0 : i32
    %c0_i32_0 = arith.constant 0 : i32
    return %arg0, %c0_i32 : i32, i32
  }
  func.func @transform_4(%arg0: i32) -> (i32, i32) {
    %c0_i32 = arith.constant 0 : i32
    %c0_i32_0 = arith.constant 0 : i32
    return %arg0, %c0_i32 : i32, i32
  }
}

</mosaic_0001>

<llo_original>
// kernel: tpu_custom_call.1
$region0: #{tpu_custom_call.1}
  #allocation0 [shape = 'u32[]', space=smem, size = 0x4, offset = 0x4, fixed_abs, tag = 'smem constant byte address 0x4 - core index']
  #allocation1 [shape = 'u32[72,128]{1,0:T(1,128)}', space=vmem, size = 0x9000, scoped, tag = 'internal scratch']
  %s0 = inlined_call_operand.vmem [shape: f32[8,32], index: 0, kind: input, shape index: {}]
  %s1 = inlined_call_operand.vmem [shape: f32[32,16], index: 1, kind: input, shape index: {}]
  %s2 = inlined_call_operand.vmem [shape: f32[1,16], index: 2, kind: input, shape index: {}]
  %s3 = inlined_call_operand.hbm [shape: f32[8,16], index: 3, kind: output, shape index: {0}]
  %s4 = inlined_call_operand.hbm [shape: f32[1,16], index: 4, kind: output, shape index: {1}]
  %5 = xla_tuple %s3, %s4
  %s6 = sld [smem:[#allocation0]]
  $region30: #{tpu_custom_call.1} parent=0
    _
  %s8 = ssub.s32 1, %s6
  %s9 = scalar_select 0, %s8, %s6
  $region1: #{tpu_custom_call.1} parent=0
    #allocation2 [shape = 'u8[4096]{0}', space=vmem, size = 0x1000, scoped, tag = 'output window, operand 0, single buffered']
    #allocation3 [shape = 's32[1]{0}', space=sflag, size = 0x4, scoped, tag = 'scoped memory for tpu_custom_call.1']
    #allocation4 [shape = 'u8[512]{0}', space=vmem, size = 0x400, scoped, tag = 'output window, operand 1, single buffered']
    #allocation5 [shape = 's32[1]{0}', space=sflag, size = 0x4, scoped, tag = 'scoped memory for tpu_custom_call.1']
    %10 = vsyncpa [#allocation3], 0
    %11 = vsyncpa [#allocation5], 0
    // Predicated region
    $region2: #{tpu_custom_call.1} parent=1 // pred_check
      _
    $region3: #{tpu_custom_call.1} parent=1 // pred_check_branch
      %13 = sbr.rel (0) target = $region5
    $region4: #{tpu_custom_call.1} parent=1 // pred_region
      _
    $region5: #{tpu_custom_call.1} parent=1 // pred_fallthru
      _
    // Predicated region
    $region6: #{tpu_custom_call.1} parent=1 // pred_check
      _
    $region7: #{tpu_custom_call.1} parent=1 // pred_check_branch
      %15 = sbr.rel (0) target = $region9
    $region8: #{tpu_custom_call.1} parent=1 // pred_region
      _
    $region9: #{tpu_custom_call.1} parent=1 // pred_fallthru
      _
    // Predicated region
    $region10: #{tpu_custom_call.1} parent=1 // pred_check
      _
    $region11: #{tpu_custom_call.1} parent=1 // pred_check_branch
      %17 = sbr.rel (0) target = $region13
    $region12: #{tpu_custom_call.1} parent=1 // pred_region
      _
    $region13: #{tpu_custom_call.1} parent=1 // pred_fallthru
      _
    %v18 = vld [vmem:[%s0] sm:$0xff]
    %v19 = vld [vmem:[%s1] sm:$0xff]
    %v20 = vld [vmem:[%s1 + $0x8] sm:$0xff]
    %v21 = vld [vmem:[%s1 + $0x10] sm:$0xff]
    %v22 = vld [vmem:[%s1 + $0x18] sm:$0xff]
    %v23 = vld [vmem:[%s2] sm:$0x1]
    %v25 = vperm.slane %v23, 0
    %vm27 = vcmask 261120
    %v29 = vsel %vm27, %v18, 0
    %31 = vmatpush.msra.mxu0 0.0
    %32 = vmatpush.msra.mxu0 0.0
    %33 = vmatpush.msra.mxu0 0.0
    %34 = vmatpush.msra.mxu0 0.0
    %35 = vmatpush.msra.mxu0 0.0
    %36 = vmatpush.msra.mxu0 0.0
    %37 = vmatpush.msra.mxu0 0.0
    %38 = vmatpush.msra.mxu0 0.0
    %39 = vmatpush.msra.mxu0 0.0
    %40 = vmatpush.msra.mxu0 0.0
    %41 = vmatpush.msra.mxu0 0.0
    %42 = vmatpush.msra.mxu0 0.0
    %v43 = vand.u32 %v22, 4294901760
    %44 = vmatpush.msra.mxu0 %v43
    %v45 = vand.u32 %v21, 4294901760
    %46 = vmatpush.msra.mxu0 %v45
    %v47 = vand.u32 %v20, 4294901760
    %48 = vmatpush.msra.mxu0 %v47
    %v49 = vand.u32 %v19, 4294901760
    %50 = vmatpush.msra.mxu0 %v49
    %v51 = vand.u32 %v29, 4294901760
    %v52 = vsub.f32 %v29, %v51
    %v53 = vand.u32 %v52, 4294901760
    %v54 = vsub.f32 %v52, %v53
    %v55 = vand.u32 %v54, 4294901760
    %56 = vmatmul.f32.gmra.mxu0 %v55
    %v57 = vpop.f32.mrf.mxu0
    %v58 = vadd.f32 %v25, %v57
    %59 = vdwg.mxu0
    %60 = vmatpush.msra.mxu0 0.0
    %61 = vmatpush.msra.mxu0 0.0
    %62 = vmatpush.msra.mxu0 0.0
    %63 = vmatpush.msra.mxu0 0.0
    %64 = vmatpush.msra.mxu0 0.0
    %65 = vmatpush.msra.mxu0 0.0
    %66 = vmatpush.msra.mxu0 0.0
    %67 = vmatpush.msra.mxu0 0.0
    %68 = vmatpush.msra.mxu0 0.0
    %69 = vmatpush.msra.mxu0 0.0
    %70 = vmatpush.msra.mxu0 0.0
    %71 = vmatpush.msra.mxu0 0.0
    %v72 = vand.u32 %v22, 4294901760
    %v73 = vsub.f32 %v22, %v72
    %v74 = vand.u32 %v73, 4294901760
    %v75 = vsub.f32 %v73, %v74
    %v76 = vand.u32 %v75, 4294901760
    %77 = vmatpush.msra.mxu0 %v76
    %v78 = vand.u32 %v21, 4294901760
    %v79 = vsub.f32 %v21, %v78
    %v80 = vand.u32 %v79, 4294901760
    %v81 = vsub.f32 %v79, %v80
    %v82 = vand.u32 %v81, 4294901760
    %83 = vmatpush.msra.mxu0 %v82
    %v84 = vand.u32 %v20, 4294901760
    %v85 = vsub.f32 %v20, %v84
    %v86 = vand.u32 %v85, 4294901760
    %v87 = vsub.f32 %v85, %v86
    %v88 = vand.u32 %v87, 4294901760
    %89 = vmatpush.msra.mxu0 %v88
    %v90 = vand.u32 %v19, 4294901760
    %v91 = vsub.f32 %v19, %v90
    %v92 = vand.u32 %v91, 4294901760
    %v93 = vsub.f32 %v91, %v92
    %v94 = vand.u32 %v93, 4294901760
    %95 = vmatpush.msra.mxu0 %v94
    %v96 = vand.u32 %v29, 4294901760
    %97 = vmatmul.f32.gmra.mxu0 %v96
    %v98 = vpop.f32.mrf.mxu0
    %v99 = vadd.f32 %v58, %v98
    %100 = vdwg.mxu0
    %101 = vmatpush.msra.mxu0 0.0
    %102 = vmatpush.msra.mxu0 0.0
    %103 = vmatpush.msra.mxu0 0.0
    %104 = vmatpush.msra.mxu0 0.0
    %105 = vmatpush.msra.mxu0 0.0
    %106 = vmatpush.msra.mxu0 0.0
    %107 = vmatpush.msra.mxu0 0.0
    %108 = vmatpush.msra.mxu0 0.0
    %109 = vmatpush.msra.mxu0 0.0
    %110 = vmatpush.msra.mxu0 0.0
    %111 = vmatpush.msra.mxu0 0.0
    %112 = vmatpush.msra.mxu0 0.0
    %v113 = vand.u32 %v22, 4294901760
    %v114 = vsub.f32 %v22, %v113
    %115 = vmatpush.msra.mxu0 %v114
    %v116 = vand.u32 %v21, 4294901760
    %v117 = vsub.f32 %v21, %v116
    %118 = vmatpush.msra.mxu0 %v117
    %v119 = vand.u32 %v20, 4294901760
    %v120 = vsub.f32 %v20, %v119
    %121 = vmatpush.msra.mxu0 %v120
    %v122 = vand.u32 %v19, 4294901760
    %v123 = vsub.f32 %v19, %v122
    %124 = vmatpush.msra.mxu0 %v123
    %v125 = vand.u32 %v29, 4294901760
    %v126 = vsub.f32 %v29, %v125
    %127 = vmatmul.f32.gmra.mxu0 %v126
    %v128 = vpop.f32.mrf.mxu0
    %v129 = vadd.f32 %v99, %v128
    %130 = vdwg.mxu0
    %131 = vmatpush.msra.mxu0 0.0
    %132 = vmatpush.msra.mxu0 0.0
    %133 = vmatpush.msra.mxu0 0.0
    %134 = vmatpush.msra.mxu0 0.0
    %135 = vmatpush.msra.mxu0 0.0
    %136 = vmatpush.msra.mxu0 0.0
    %137 = vmatpush.msra.mxu0 0.0
    %138 = vmatpush.msra.mxu0 0.0
    %139 = vmatpush.msra.mxu0 0.0
    %140 = vmatpush.msra.mxu0 0.0
    %141 = vmatpush.msra.mxu0 0.0
    %142 = vmatpush.msra.mxu0 0.0
    %v143 = vand.u32 %v22, 4294901760
    %144 = vmatpush.msra.mxu0 %v143
    %v145 = vand.u32 %v21, 4294901760
    %146 = vmatpush.msra.mxu0 %v145
    %v147 = vand.u32 %v20, 4294901760
    %148 = vmatpush.msra.mxu0 %v147
    %v149 = vand.u32 %v19, 4294901760
    %150 = vmatpush.msra.mxu0 %v149
    %v151 = vand.u32 %v29, 4294901760
    %v152 = vsub.f32 %v29, %v151
    %v153 = vand.u32 %v152, 4294901760
    %154 = vmatmul.f32.gmra.mxu0 %v153
    %v155 = vpop.f32.mrf.mxu0
    %v156 = vadd.f32 %v129, %v155
    %157 = vdwg.mxu0
    %158 = vmatpush.msra.mxu0 0.0
    %159 = vmatpush.msra.mxu0 0.0
    %160 = vmatpush.msra.mxu0 0.0
    %161 = vmatpush.msra.mxu0 0.0
    %162 = vmatpush.msra.mxu0 0.0
    %163 = vmatpush.msra.mxu0 0.0
    %164 = vmatpush.msra.mxu0 0.0
    %165 = vmatpush.msra.mxu0 0.0
    %166 = vmatpush.msra.mxu0 0.0
    %167 = vmatpush.msra.mxu0 0.0
    %168 = vmatpush.msra.mxu0 0.0
    %169 = vmatpush.msra.mxu0 0.0
    %v170 = vand.u32 %v22, 4294901760
    %v171 = vsub.f32 %v22, %v170
    %v172 = vand.u32 %v171, 4294901760
    %173 = vmatpush.msra.mxu0 %v172
    %v174 = vand.u32 %v21, 4294901760
    %v175 = vsub.f32 %v21, %v174
    %v176 = vand.u32 %v175, 4294901760
    %177 = vmatpush.msra.mxu0 %v176
    %v178 = vand.u32 %v20, 4294901760
    %v179 = vsub.f32 %v20, %v178
    %v180 = vand.u32 %v179, 4294901760
    %181 = vmatpush.msra.mxu0 %v180
    %v182 = vand.u32 %v19, 4294901760
    %v183 = vsub.f32 %v19, %v182
    %v184 = vand.u32 %v183, 4294901760
    %185 = vmatpush.msra.mxu0 %v184
    %v186 = vand.u32 %v29, 4294901760
    %187 = vmatmul.f32.gmra.mxu0 %v186
    %v188 = vpop.f32.mrf.mxu0
    %v189 = vadd.f32 %v156, %v188
    %190 = vdwg.mxu0
    %191 = vmatpush.msra.mxu0 0.0
    %192 = vmatpush.msra.mxu0 0.0
    %193 = vmatpush.msra.mxu0 0.0
    %194 = vmatpush.msra.mxu0 0.0
    %195 = vmatpush.msra.mxu0 0.0
    %196 = vmatpush.msra.mxu0 0.0
    %197 = vmatpush.msra.mxu0 0.0
    %198 = vmatpush.msra.mxu0 0.0
    %199 = vmatpush.msra.mxu0 0.0
    %200 = vmatpush.msra.mxu0 0.0
    %201 = vmatpush.msra.mxu0 0.0
    %202 = vmatpush.msra.mxu0 0.0
    %v203 = vand.u32 %v22, 4294901760
    %204 = vmatpush.msra.mxu0 %v203
    %v205 = vand.u32 %v21, 4294901760
    %206 = vmatpush.msra.mxu0 %v205
    %v207 = vand.u32 %v20, 4294901760
    %208 = vmatpush.msra.mxu0 %v207
    %v209 = vand.u32 %v19, 4294901760
    %210 = vmatpush.msra.mxu0 %v209
    %v211 = vand.u32 %v29, 4294901760
    %212 = vmatmul.f32.gmra.mxu0 %v211
    %v213 = vpop.f32.mrf.mxu0
    %v214 = vadd.f32 %v189, %v213
    %215 = vdwg.mxu0
    %vm216 = vcmask 130048
    %v217 = vsel %vm216, %v214, -inf
    %218 = vmax.xlane.f32.xlu0 %v217
    %v219 = vpop.xlane.xlu0 %218
    %v220 = vsub.f32 %v214, %v219
    %v221 = vmul.f32 %v220, 1.442695
    %v222 = vpow.pop %v221
    %v223 = vsel %vm216, %v222, 0.0
    %224 = vadd.xlane.f32.xlu0 %v223
    %v225 = vpop.xlane.xlu0 %224
    %v226 = vrcp.pop %v225
    %v227 = vmul.f32 %v225, %v226
    %v228 = vsub.f32 1.0, %v227
    %v229 = vmul.f32 %v226, %v228
    %v230 = vadd.f32 %v226, %v229
    %vm231 = vweird.f32 %v225
    %vm232 = vweird.f32 %v226
    %vm233 = vmor %vm231, %vm232
    %v234 = vsel %vm233, %v226, %v230
    %v235 = vand.u32 2147483647, %v225
    %vm236 = vcmp.eq.f32.partialorder %v235, 8.507059e+37
    %v237 = vand.u32 %v225, 2147483648
    %v238 = vor.u32 1.1754944e-38, %v237
    %v239 = vsel %vm236, %v238, %v234
    %v240 = vmul.f32 %v222, %v239
    %241 = vst.msk [vmem:[#allocation2] sm:$0xff] %vm216, %v240
    %v242 = vsel %vm216, %v240, 0.0
    %v243 = vrot.slane %v242, 4
    %v244 = vadd.f32 %v242, %v243
    %v245 = vrot.slane %v244, 2
    %v246 = vadd.f32 %v244, %v245
    %v247 = vrot.slane %v246, 1
    %v248 = vadd.f32 %v246, %v247
    %vm249 = vcmask 122880
    %250 = vst.msk [vmem:[#allocation4] sm:$0x1] %vm249, %v248
    // Predicated region
    $region14: #{tpu_custom_call.1} parent=1 // pred_check
      _
    $region15: #{tpu_custom_call.1} parent=1 // pred_check_branch
      %252 = sbr.rel (0) target = $region17
    $region16: #{tpu_custom_call.1} parent=1 // pred_region
      %254 = vsyncadd [#allocation3], 0
      %s256 = sshll.u32 [#allocation2], 4
      %s257 = int_to_ptr.vmem [resolvable:$true] %s256
      %s258 = sshll.u32 %s3, 4
      %s259 = int_to_ptr.hbm [resolvable:$true] %s258
      %261 = dma.vmem_to_hbm [thread:$0]  %s257, 128, %s259, [#allocation3]
    $region17: #{tpu_custom_call.1} parent=1 // pred_fallthru
      _
    // Predicated region
    $region18: #{tpu_custom_call.1} parent=1 // pred_check
      _
    $region19: #{tpu_custom_call.1} parent=1 // pred_check_branch
      %263 = sbr.rel (0) target = $region21
    $region20: #{tpu_custom_call.1} parent=1 // pred_region
      %265 = vsyncadd [#allocation5], 0
      %s267 = sshll.u32 [#allocation4], 4
      %s268 = int_to_ptr.vmem [resolvable:$true] %s267
      %s269 = sshll.u32 %s4, 4
      %s270 = int_to_ptr.hbm [resolvable:$true] %s269
      %272 = dma.vmem_to_hbm [thread:$0]  %s268, 16, %s270, [#allocation5]
    $region21: #{tpu_custom_call.1} parent=1 // pred_fallthru
      _
    // Predicated region
    $region22: #{tpu_custom_call.1} parent=1 // pred_check
      _
    $region23: #{tpu_custom_call.1} parent=1 // pred_check_branch
      %274 = sbr.rel (0) target = $region25
    $region24: #{tpu_custom_call.1} parent=1 // pred_region
      %276 = dma.done [#allocation3], 128
    $region25: #{tpu_custom_call.1} parent=1 // pred_fallthru
      _
    // Predicated region
    $region26: #{tpu_custom_call.1} parent=1 // pred_check
      _
    $region27: #{tpu_custom_call.1} parent=1 // pred_check_branch
      %278 = sbr.rel (0) target = $region29
    $region28: #{tpu_custom_call.1} parent=1 // pred_region
      %280 = dma.done [#allocation5], 16
    $region29: #{tpu_custom_call.1} parent=1 // pred_fallthru
      _
    %281 = vsyncpa [#allocation3], 1
    %282 = vsyncpa [#allocation5], 1

</llo_original>
